<compile_context>
chip_gen: v7x
topology: tpu7x:2x2x1
jax: 0.10.0
libtpu: 0.0.40
codegen_flags: <defaults>
</compile_context>

<pallas_src>
import jax
import jax.numpy as jnp
from jax.experimental import pallas as pl
from jax.experimental.pallas import tpu as pltpu


def _make_mlp_kernel(act_dtype):
    """act_dtype: dtype used for the tanh activations (bf16 on v6e/v7x)."""

    def _mlp_kernel(x_ref, w1_ref, b1_ref, w2_ref, b2_ref,
                    w3_ref, b3_ref, w4_ref, b4_ref, o_ref):
        # x_ref: (5, tile_b) bf16   hidden: (64, tile_b)   output: (1, tile_b)
        xt = x_ref[...]                                      # bf16 MXU operand

        h = jnp.dot(w1_ref[...], xt,
                    preferred_element_type=jnp.float32) + b1_ref[...]
        h = jnp.tanh(h.astype(act_dtype)).astype(jnp.bfloat16)  # Dropout -> id

        h = jnp.dot(w2_ref[...], h,
                    preferred_element_type=jnp.float32) + b2_ref[...]
        h = jnp.tanh(h.astype(act_dtype)).astype(jnp.bfloat16)

        h = jnp.dot(w3_ref[...], h,
                    preferred_element_type=jnp.float32) + b3_ref[...]
        h = jnp.tanh(h.astype(act_dtype)).astype(jnp.bfloat16)

        out = jnp.dot(w4_ref[...], h,
                      preferred_element_type=jnp.float32) + b4_ref[...]
        o_ref[...] = out.astype(o_ref.dtype)

    return _mlp_kernel


def _round_up(n, m):
    return pl.cdiv(n, m) * m


def _default_act_dtype():
    """bf16 activations on v6e/v7x (bf16 EUP); f32 on v5e and older."""
    try:
        kind = jax.devices()[0].device_kind.lower()
    except Exception:  # pragma: no cover - defensive
        return jnp.float32
    if any(t in kind for t in ("v2", "v3", "v4", "v5")):
        return jnp.float32
    return jnp.bfloat16


def extrader_forward(x, params, *, tile_b=8192, act_dtype=None):
    """x: (B, 5) float32.  params: PyTorch-native (out, in) weights, (out, 1) biases."""
    B, F = x.shape
    assert F == 5
    if act_dtype is None:
        act_dtype = _default_act_dtype()

    # --- Tile selection -----------------------------------------------------
    # Lane-dense batch tile (multiple of 128).  Derive the tile from the step
    # count so padding waste beyond the 128-rounding is at most 128*num_steps.
    B128 = _round_up(B, 128)
    tile_req = max(128, _round_up(min(tile_b, B128), 128))
    num_steps = pl.cdiv(B128, tile_req)
    # Keep >= 2 "parallel" grid steps when possible so v7x shards over both
    # TensorCores; costs at most one extra ~0.35us step on 1-TC chips.
    if B128 >= 256:
        num_steps = max(num_steps, 2)
    tile = _round_up(pl.cdiv(B128, num_steps), 128)
    B_pad = num_steps * tile

    # --- Wrapper-side layout plumbing (fused pad + transpose, bf16 DMA) ------
    x_t = jnp.pad(x, ((0, B_pad - B), (0, 0))).T.astype(jnp.bfloat16)

    # Weights bf16 (MXU operands); biases stay f32 (added into f32 accumulator).
    w1 = params["w1"].astype(jnp.bfloat16)   # (64, 5)
    w2 = params["w2"].astype(jnp.bfloat16)   # (64, 64)
    w3 = params["w3"].astype(jnp.bfloat16)   # (64, 64)
    w4 = params["w4"].astype(jnp.bfloat16)   # (1, 64)
    b1, b2, b3, b4 = params["b1"], params["b2"], params["b3"], params["b4"]

    # Tiny constant operands: full-array blocks with a constant index map,
    # so they remain VMEM-resident across every grid step (no re-DMA).
    def full(a):
        return pl.BlockSpec(a.shape, lambda i: (0,) * a.ndim)

    out_t = pl.pallas_call(
        _make_mlp_kernel(act_dtype),
        out_shape=jax.ShapeDtypeStruct((1, B_pad), x.dtype),
        grid_spec=pltpu.PrefetchScalarGridSpec(
            num_scalar_prefetch=0,
            grid=(num_steps,),
            in_specs=[
                pl.BlockSpec((F, tile), lambda i: (0, i)),
                full(w1), full(b1),
                full(w2), full(b2),
                full(w3), full(b3),
                full(w4), full(b4),
            ],
            out_specs=pl.BlockSpec((1, tile), lambda i: (0, i)),
        ),
        compiler_params=pltpu.CompilerParams(
            dimension_semantics=("parallel",),
            # Headroom for the (64, tile) f32/bf16 intermediates; well under
            # physical VMEM on every generation (incl. v7x's 64 MiB).
            vmem_limit_bytes=32 * 1024 * 1024,
        ),
    )(x_t, w1, b1, w2, b2, w3, b3, w4, b4)

    # Drop padding, return (B, 1) like the PyTorch module.
    return out_t[:, :B].T


def init_params(key):
    """Deterministic init mimicking nn.Linear default: U(-1/sqrt(fan_in), +...).

    Stored PyTorch-native: weights (out_features, in_features), biases (out, 1).
    """
    sizes = [(5, 64), (64, 64), (64, 64), (64, 1)]
    params = {}
    for idx, (fan_in, fan_out) in enumerate(sizes, start=1):
        key, kw, kb = jax.random.split(key, 3)
        bound = 1.0 / jnp.sqrt(float(fan_in))
        params[f"w{idx}"] = jax.random.uniform(
            kw, (fan_out, fan_in), jnp.float32, -bound, bound)
        params[f"b{idx}"] = jax.random.uniform(
            kb, (fan_out, 1), jnp.float32, -bound, bound)
    return params


def _reference(x, params):
    h = jnp.tanh(x @ params["w1"].T + params["b1"].T)
    h = jnp.tanh(h @ params["w2"].T + params["b2"].T)
    h = jnp.tanh(h @ params["w3"].T + params["b3"].T)
    return h @ params["w4"].T + params["b4"].T


if __name__ == "__main__":
    key = jax.random.PRNGKey(0)
    kx, kp = jax.random.split(key)

    B = 8
    x = jax.random.normal(kx, (B, 5), jnp.float32)
    params = init_params(kp)

    out = extrader_forward(x, params)
    out = jax.block_until_ready(out)

    ref = _reference(x, params)
    assert out.shape == (B, 1), out.shape
    # bf16 MXU operands (+ bf16 tanh on v6e/v7x) vs an f32 reference: loosened
    # tolerance per the review (outputs are O(0.1-1), tanh-bounded hiddens).
    assert jnp.allclose(out, ref, atol=5e-2, rtol=5e-2), "mismatch vs reference"

    print("KERNEL_OK")
</pallas_src>

<mosaic_0001>
module attributes {stable_mosaic.version = 11 : i64} {
  func.func @_mlp_kernel(%arg0: i32, %arg1: memref<5x128xbf16, #tpu.memory_space<vmem>>, %arg2: memref<64x5xbf16, #tpu.memory_space<vmem>>, %arg3: memref<64x1xf32, #tpu.memory_space<vmem>>, %arg4: memref<64x64xbf16, #tpu.memory_space<vmem>>, %arg5: memref<64x1xf32, #tpu.memory_space<vmem>>, %arg6: memref<64x64xbf16, #tpu.memory_space<vmem>>, %arg7: memref<64x1xf32, #tpu.memory_space<vmem>>, %arg8: memref<1x64xbf16, #tpu.memory_space<vmem>>, %arg9: memref<1x1xf32, #tpu.memory_space<vmem>>, %arg10: memref<1x128xf32, #tpu.memory_space<vmem>>) attributes {dimension_semantics = [#tpu.dimension_semantics<parallel>], iteration_bounds = array<i64: 1>, scalar_prefetch = 0 : i64, scratch_operands = 0 : i64, tpu.core_type = #tpu.core_type<tc>, window_params = [{transform_indices = @transform_0, window_bounds = array<i64: 5, 128>}, {pipeline_mode = #tpu.pipeline_mode<synchronous>, transform_indices = @transform_1, window_bounds = array<i64: 64, 5>}, {pipeline_mode = #tpu.pipeline_mode<synchronous>, transform_indices = @transform_2, window_bounds = array<i64: 64, 1>}, {pipeline_mode = #tpu.pipeline_mode<synchronous>, transform_indices = @transform_3, window_bounds = array<i64: 64, 64>}, {pipeline_mode = #tpu.pipeline_mode<synchronous>, transform_indices = @transform_4, window_bounds = array<i64: 64, 1>}, {pipeline_mode = #tpu.pipeline_mode<synchronous>, transform_indices = @transform_5, window_bounds = array<i64: 64, 64>}, {pipeline_mode = #tpu.pipeline_mode<synchronous>, transform_indices = @transform_6, window_bounds = array<i64: 64, 1>}, {pipeline_mode = #tpu.pipeline_mode<synchronous>, transform_indices = @transform_7, window_bounds = array<i64: 1, 64>}, {pipeline_mode = #tpu.pipeline_mode<synchronous>, transform_indices = @transform_8, window_bounds = array<i64: 1, 1>}, {transform_indices = @transform_9, window_bounds = array<i64: 1, 128>}]} {
    %c0 = arith.constant 0 : index
    %c0_0 = arith.constant 0 : index
    %0 = vector.load %arg1[%c0, %c0_0] : memref<5x128xbf16, #tpu.memory_space<vmem>>, vector<5x128xbf16>
    %c0_1 = arith.constant 0 : index
    %c0_2 = arith.constant 0 : index
    %1 = vector.load %arg2[%c0_1, %c0_2] : memref<64x5xbf16, #tpu.memory_space<vmem>>, vector<64x5xbf16>
    %cst = arith.constant dense<0.000000e+00> : vector<64x128xf32>
    %2 = tpu.matmul %1, %0, %cst {dimension_numbers = #tpu.dot_dimension_numbers<[1], [0], [0], [1], [0, 0, 1, 1], [], []>} : vector<64x5xbf16>, vector<5x128xbf16>, vector<64x128xf32> -> vector<64x128xf32>
    %c0_3 = arith.constant 0 : index
    %c0_4 = arith.constant 0 : index
    %3 = vector.load %arg3[%c0_3, %c0_4] : memref<64x1xf32, #tpu.memory_space<vmem>>, vector<64x1xf32>
    %4 = vector.broadcast %3 : vector<64x1xf32> to vector<64x128xf32>
    %5 = arith.addf %2, %4 : vector<64x128xf32>
    %6 = arith.truncf %5 : vector<64x128xf32> to vector<64x128xbf16>
    %7 = math.tanh %6 : vector<64x128xbf16>
    %c0_5 = arith.constant 0 : index
    %c0_6 = arith.constant 0 : index
    %8 = vector.load %arg4[%c0_5, %c0_6] : memref<64x64xbf16, #tpu.memory_space<vmem>>, vector<64x64xbf16>
    %cst_7 = arith.constant dense<0.000000e+00> : vector<64x128xf32>
    %9 = tpu.matmul %8, %7, %cst_7 {dimension_numbers = #tpu.dot_dimension_numbers<[1], [0], [0], [1], [0, 0, 1, 1], [], []>} : vector<64x64xbf16>, vector<64x128xbf16>, vector<64x128xf32> -> vector<64x128xf32>
    %c0_8 = arith.constant 0 : index
    %c0_9 = arith.constant 0 : index
    %10 = vector.load %arg5[%c0_8, %c0_9] : memref<64x1xf32, #tpu.memory_space<vmem>>, vector<64x1xf32>
    %11 = vector.broadcast %10 : vector<64x1xf32> to vector<64x128xf32>
    %12 = arith.addf %9, %11 : vector<64x128xf32>
    %13 = arith.truncf %12 : vector<64x128xf32> to vector<64x128xbf16>
    %14 = math.tanh %13 : vector<64x128xbf16>
    %c0_10 = arith.constant 0 : index
    %c0_11 = arith.constant 0 : index
    %15 = vector.load %arg6[%c0_10, %c0_11] : memref<64x64xbf16, #tpu.memory_space<vmem>>, vector<64x64xbf16>
    %cst_12 = arith.constant dense<0.000000e+00> : vector<64x128xf32>
    %16 = tpu.matmul %15, %14, %cst_12 {dimension_numbers = #tpu.dot_dimension_numbers<[1], [0], [0], [1], [0, 0, 1, 1], [], []>} : vector<64x64xbf16>, vector<64x128xbf16>, vector<64x128xf32> -> vector<64x128xf32>
    %c0_13 = arith.constant 0 : index
    %c0_14 = arith.constant 0 : index
    %17 = vector.load %arg7[%c0_13, %c0_14] : memref<64x1xf32, #tpu.memory_space<vmem>>, vector<64x1xf32>
    %18 = vector.broadcast %17 : vector<64x1xf32> to vector<64x128xf32>
    %19 = arith.addf %16, %18 : vector<64x128xf32>
    %20 = arith.truncf %19 : vector<64x128xf32> to vector<64x128xbf16>
    %21 = math.tanh %20 : vector<64x128xbf16>
    %c0_15 = arith.constant 0 : index
    %c0_16 = arith.constant 0 : index
    %22 = vector.load %arg8[%c0_15, %c0_16] : memref<1x64xbf16, #tpu.memory_space<vmem>>, vector<1x64xbf16>
    %cst_17 = arith.constant dense<0.000000e+00> : vector<1x128xf32>
    %23 = tpu.matmul %22, %21, %cst_17 {dimension_numbers = #tpu.dot_dimension_numbers<[1], [0], [0], [1], [0, 0, 1, 1], [], []>} : vector<1x64xbf16>, vector<64x128xbf16>, vector<1x128xf32> -> vector<1x128xf32>
    %c0_18 = arith.constant 0 : index
    %c0_19 = arith.constant 0 : index
    %24 = vector.load %arg9[%c0_18, %c0_19] : memref<1x1xf32, #tpu.memory_space<vmem>>, vector<1x1xf32>
    %25 = vector.broadcast %24 : vector<1x1xf32> to vector<1x128xf32>
    %26 = arith.addf %23, %25 : vector<1x128xf32>
    %c0_20 = arith.constant 0 : index
    %c0_21 = arith.constant 0 : index
    %27 = vector.load %arg10[%c0_20, %c0_21] : memref<1x128xf32, #tpu.memory_space<vmem>>, vector<1x128xf32>
    tpu.vector_store %arg10[%c0_20, %c0_21], %26 {strides = array<i32>} : memref<1x128xf32, #tpu.memory_space<vmem>>, vector<1x128xf32>,
    return
  }
  func.func @transform_0(%arg0: i32) -> (i32, i32) {
    %c0_i32 = arith.constant 0 : i32
    %c0_i32_0 = arith.constant 0 : i32
    return %c0_i32, %arg0 : i32, i32
  }
  func.func @transform_1(%arg0: i32) -> (i32, i32) {
    %c0_i32 = arith.constant 0 : i32
    %c0_i32_0 = arith.constant 0 : i32
    %c0_i32_1 = arith.constant 0 : i32
    return %c0_i32, %c0_i32_0 : i32, i32
  }
  func.func @transform_2(%arg0: i32) -> (i32, i32) {
    %c0_i32 = arith.constant 0 : i32
    %c0_i32_0 = arith.constant 0 : i32
    %c0_i32_1 = arith.constant 0 : i32
    return %c0_i32, %c0_i32_0 : i32, i32
  }
  func.func @transform_3(%arg0: i32) -> (i32, i32) {
    %c0_i32 = arith.constant 0 : i32
    %c0_i32_0 = arith.constant 0 : i32
    %c0_i32_1 = arith.constant 0 : i32
    return %c0_i32, %c0_i32_0 : i32, i32
  }
  func.func @transform_4(%arg0: i32) -> (i32, i32) {
    %c0_i32 = arith.constant 0 : i32
    %c0_i32_0 = arith.constant 0 : i32
    %c0_i32_1 = arith.constant 0 : i32
    return %c0_i32, %c0_i32_0 : i32, i32
  }
  func.func @transform_5(%arg0: i32) -> (i32, i32) {
    %c0_i32 = arith.constant 0 : i32
    %c0_i32_0 = arith.constant 0 : i32
    %c0_i32_1 = arith.constant 0 : i32
    return %c0_i32, %c0_i32_0 : i32, i32
  }
  func.func @transform_6(%arg0: i32) -> (i32, i32) {
    %c0_i32 = arith.constant 0 : i32
    %c0_i32_0 = arith.constant 0 : i32
    %c0_i32_1 = arith.constant 0 : i32
    return %c0_i32, %c0_i32_0 : i32, i32
  }
  func.func @transform_7(%arg0: i32) -> (i32, i32) {
    %c0_i32 = arith.constant 0 : i32
    %c0_i32_0 = arith.constant 0 : i32
    %c0_i32_1 = arith.constant 0 : i32
    return %c0_i32, %c0_i32_0 : i32, i32
  }
  func.func @transform_8(%arg0: i32) -> (i32, i32) {
    %c0_i32 = arith.constant 0 : i32
    %c0_i32_0 = arith.constant 0 : i32
    %c0_i32_1 = arith.constant 0 : i32
    return %c0_i32, %c0_i32_0 : i32, i32
  }
  func.func @transform_9(%arg0: i32) -> (i32, i32) {
    %c0_i32 = arith.constant 0 : i32
    %c0_i32_0 = arith.constant 0 : i32
    return %c0_i32, %arg0 : i32, i32
  }
}

</mosaic_0001>

<llo_original>
// kernel: tpu_custom_call.1
$region0: #{tpu_custom_call.1}
  #allocation0 [shape = 'u32[]', space=smem, size = 0x4, offset = 0x4, fixed_abs, tag = 'smem constant byte address 0x4 - core index']
  #allocation1 [shape = 'u32[144,128]{1,0:T(1,128)}', space=vmem, size = 0x12000, scoped, tag = 'internal scratch']
  #allocation2 [shape = 'f32[1,1]{1,0:T(1,128)S(1)}', space=vmem, size = 0x200, scoped, tag = 'scoped memory for tpu_custom_call.1']
  %s0 = inlined_call_operand.vmem [shape: bf16[5,128], index: 0, kind: input, shape index: {}]
  %s1 = inlined_call_operand.vmem [shape: bf16[64,5], index: 1, kind: input, shape index: {}]
  %s2 = inlined_call_operand.vmem [shape: f32[64,1], index: 2, kind: input, shape index: {}]
  %s3 = inlined_call_operand.vmem [shape: bf16[64,64], index: 3, kind: input, shape index: {}]
  %s4 = inlined_call_operand.vmem [shape: f32[64,1], index: 4, kind: input, shape index: {}]
  %s5 = inlined_call_operand.vmem [shape: bf16[64,64], index: 5, kind: input, shape index: {}]
  %s6 = inlined_call_operand.vmem [shape: f32[64,1], index: 6, kind: input, shape index: {}]
  %s7 = inlined_call_operand.vmem [shape: bf16[1,64], index: 7, kind: input, shape index: {}]
  %s8 = inlined_call_operand.<no memory space> [shape: f32[1,1], index: 8, kind: input, shape index: {}]
  %s9 = inlined_call_operand.hbm [shape: f32[1,128], index: 9, kind: output, shape index: {}]
  %s10 = sld [smem:[#allocation0]]
  $region46: #{tpu_custom_call.1} parent=0
    _
  %s12 = ssub.s32 1, %s10
  %s13 = scalar_select 0, %s12, %s10
  %v14 = vstv %s8
  %15 = vst [vmem:[#allocation2] sm:$0x1] %v14
  $region1: #{tpu_custom_call.1} parent=0
    #allocation3 [shape = 'u8[512]{0}', space=vmem, size = 0x400, scoped, tag = 'output window, operand 0, single buffered']
    #allocation4 [shape = 's32[1]{0}', space=sflag, size = 0x4, scoped, tag = 'scoped memory for tpu_custom_call.1']
    %16 = vsyncpa [#allocation4], 0
    // Predicated region
    $region2: #{tpu_custom_call.1} parent=1 // pred_check
      _
    $region3: #{tpu_custom_call.1} parent=1 // pred_check_branch
      %18 = sbr.rel (0) target = $region5
    $region4: #{tpu_custom_call.1} parent=1 // pred_region
      _
    $region5: #{tpu_custom_call.1} parent=1 // pred_fallthru
      _
    // Predicated region
    $region6: #{tpu_custom_call.1} parent=1 // pred_check
      _
    $region7: #{tpu_custom_call.1} parent=1 // pred_check_branch
      %20 = sbr.rel (0) target = $region9
    $region8: #{tpu_custom_call.1} parent=1 // pred_region
      _
    $region9: #{tpu_custom_call.1} parent=1 // pred_fallthru
      _
    // Predicated region
    $region10: #{tpu_custom_call.1} parent=1 // pred_check
      _
    $region11: #{tpu_custom_call.1} parent=1 // pred_check_branch
      %22 = sbr.rel (0) target = $region13
    $region12: #{tpu_custom_call.1} parent=1 // pred_region
      _
    $region13: #{tpu_custom_call.1} parent=1 // pred_fallthru
      _
    // Predicated region
    $region14: #{tpu_custom_call.1} parent=1 // pred_check
      _
    $region15: #{tpu_custom_call.1} parent=1 // pred_check_branch
      %24 = sbr.rel (0) target = $region17
    $region16: #{tpu_custom_call.1} parent=1 // pred_region
      _
    $region17: #{tpu_custom_call.1} parent=1 // pred_fallthru
      _
    // Predicated region
    $region18: #{tpu_custom_call.1} parent=1 // pred_check
      _
    $region19: #{tpu_custom_call.1} parent=1 // pred_check_branch
      %26 = sbr.rel (0) target = $region21
    $region20: #{tpu_custom_call.1} parent=1 // pred_region
      _
    $region21: #{tpu_custom_call.1} parent=1 // pred_fallthru
      _
    // Predicated region
    $region22: #{tpu_custom_call.1} parent=1 // pred_check
      _
    $region23: #{tpu_custom_call.1} parent=1 // pred_check_branch
      %28 = sbr.rel (0) target = $region25
    $region24: #{tpu_custom_call.1} parent=1 // pred_region
      _
    $region25: #{tpu_custom_call.1} parent=1 // pred_fallthru
      _
    // Predicated region
    $region26: #{tpu_custom_call.1} parent=1 // pred_check
      _
    $region27: #{tpu_custom_call.1} parent=1 // pred_check_branch
      %30 = sbr.rel (0) target = $region29
    $region28: #{tpu_custom_call.1} parent=1 // pred_region
      _
    $region29: #{tpu_custom_call.1} parent=1 // pred_fallthru
      _
    // Predicated region
    $region30: #{tpu_custom_call.1} parent=1 // pred_check
      _
    $region31: #{tpu_custom_call.1} parent=1 // pred_check_branch
      %32 = sbr.rel (0) target = $region33
    $region32: #{tpu_custom_call.1} parent=1 // pred_region
      _
    $region33: #{tpu_custom_call.1} parent=1 // pred_fallthru
      _
    // Predicated region
    $region34: #{tpu_custom_call.1} parent=1 // pred_check
      _
    $region35: #{tpu_custom_call.1} parent=1 // pred_check_branch
      %34 = sbr.rel (0) target = $region37
    $region36: #{tpu_custom_call.1} parent=1 // pred_region
      _
    $region37: #{tpu_custom_call.1} parent=1 // pred_fallthru
      _
    %v36 = vld [vmem:[%s0] sm:$0x7]
    %v37 = vld [vmem:[%s1] sm:$0xf]
    %v38 = vld [vmem:[%s1 + $0x4] sm:$0xf]
    %v39 = vld [vmem:[%s1 + $0x8] sm:$0xf]
    %v40 = vld [vmem:[%s1 + $0xc] sm:$0xf]
    %v41 = vld [vmem:[%s1 + $0x10] sm:$0xf]
    %v42 = vld [vmem:[%s1 + $0x14] sm:$0xf]
    %v43 = vld [vmem:[%s1 + $0x18] sm:$0xf]
    %v44 = vld [vmem:[%s1 + $0x1c] sm:$0xf]
    %v45 = vld [vmem:[%s2] sm:$0xff]
    %v46 = vld [vmem:[%s2 + $0x8] sm:$0xff]
    %v47 = vld [vmem:[%s2 + $0x10] sm:$0xff]
    %v48 = vld [vmem:[%s2 + $0x18] sm:$0xff]
    %v49 = vld [vmem:[%s2 + $0x20] sm:$0xff]
    %v50 = vld [vmem:[%s2 + $0x28] sm:$0xff]
    %v51 = vld [vmem:[%s2 + $0x30] sm:$0xff]
    %v52 = vld [vmem:[%s2 + $0x38] sm:$0xff]
    %54 = vset.pattern.permute.xlu0 0
    %55 = vperm.xlu0 %54, %v45
    %v56 = vpop.permute.xlu0 %55
    %59 = vset.pattern.permute.xlu0 0
    %60 = vperm.xlu0 %59, %v46
    %v61 = vpop.permute.xlu0 %60
    %64 = vset.pattern.permute.xlu0 0
    %65 = vperm.xlu0 %64, %v47
    %v66 = vpop.permute.xlu0 %65
    %69 = vset.pattern.permute.xlu0 0
    %70 = vperm.xlu0 %69, %v48
    %v71 = vpop.permute.xlu0 %70
    %74 = vset.pattern.permute.xlu0 0
    %75 = vperm.xlu0 %74, %v49
    %v76 = vpop.permute.xlu0 %75
    %79 = vset.pattern.permute.xlu0 0
    %80 = vperm.xlu0 %79, %v50
    %v81 = vpop.permute.xlu0 %80
    %84 = vset.pattern.permute.xlu0 0
    %85 = vperm.xlu0 %84, %v51
    %v86 = vpop.permute.xlu0 %85
    %89 = vset.pattern.permute.xlu0 0
    %90 = vperm.xlu0 %89, %v52
    %v91 = vpop.permute.xlu0 %90
    %v101 = vunpack.c.l.b16 %v37
    %v102 = vunpack.c.l.b16 %v38
    %v103 = vunpack.c.l.b16 %v39
    %v104 = vunpack.c.l.b16 %v40
    %v105 = vunpack.c.l.b16 %v41
    %v106 = vunpack.c.l.b16 %v42
    %v107 = vunpack.c.l.b16 %v43
    %v108 = vunpack.c.l.b16 %v44
    %v109 = vpack.c.b16 %v102, %v101
    %v110 = vpack.c.b16 %v104, %v103
    %v111 = vpack.c.b16 %v106, %v105
    %v112 = vpack.c.b16 %v108, %v107
    %vm113 = vcmask 39936
    %v115 = vsel %vm113, %v109, 0
    %v118 = vsel %vm113, %v110, 0
    %v121 = vsel %vm113, %v111, 0
    %v124 = vsel %vm113, %v112, 0
    %vm126 = vcmask 1041408
    %vm127 = vcmask 1042432
    %v128 = vsel %vm126, 4294967295, 65535
    %v129 = vsel %vm127, %v128, 0
    %v131 = vand.u32 %v36, %v129
    %133 = vmatprep.subr.bf16.mxu0 0
    %134 = vmatpush1.bf16.msra.mxu0 %v131
    %135 = vmatprep.subr.bf16.mxu0 0
    %136 = vmatpush1.bf16.msra.mxu0 0
    %137 = vmatprep.subr.bf16.mxu0 0
    %138 = vmatpush1.bf16.msra.mxu0 0
    %139 = vmatprep.subr.bf16.mxu0 0
    %140 = vmatpush1.bf16.msra.mxu0 0
    %141 = vmatprep.subr.bf16.mxu0 0
    %142 = vmatpush1.bf16.msra.mxu0 0
    %143 = vmatprep.subr.bf16.mxu0 0
    %144 = vmatpush1.bf16.msra.mxu0 0
    %145 = vmatprep.subr.bf16.mxu0 0
    %146 = vmatpush1.bf16.msra.mxu0 0
    %147 = vmatprep.subr.bf16.mxu0 0
    %148 = vmatpush1.bf16.msra.mxu0 0
    %149 = vmatprep.subr.bf16.mxu0 0
    %150 = vmatpush1.bf16.msra.mxu0 0
    %151 = vmatprep.subr.bf16.mxu0 0
    %152 = vmatpush1.bf16.msra.mxu0 0
    %153 = vmatprep.subr.bf16.mxu0 0
    %154 = vmatpush1.bf16.msra.mxu0 0
    %155 = vmatprep.subr.bf16.mxu0 0
    %156 = vmatpush1.bf16.msra.mxu0 0
    %157 = vmatprep.subr.bf16.mxu0 0
    %158 = vmatpush1.bf16.msra.mxu0 0
    %159 = vmatprep.subr.bf16.mxu0 0
    %160 = vmatpush1.bf16.msra.mxu0 0
    %161 = vmatprep.subr.bf16.mxu0 0
    %162 = vmatpush1.bf16.msra.mxu0 0
    %163 = vmatprep.subr.bf16.mxu0 0
    %164 = vmatpush1.bf16.msra.mxu0 0
    %165 = vmatprep.mubr.bf16.mxu0 0
    %166 = vmatmul.mubr.bf16.gmra.mrb[0].mxu0 %v115
    %v167 = vpop.f32.mrb[0].mxu0
    %v168 = vadd.f32 %v56, %v167
    %v169 = vpop.f32.mrb[0].mxu0
    %v170 = vpop.f32.mrb[0].mxu0
    %v171 = vadd.f32 %v61, %v170
    %v172 = vpop.f32.mrb[0].mxu0
    %173 = vmatprep.mubr.bf16.mxu0 0
    %174 = vmatmul.mubr.bf16.gmra.mrb[0].mxu0 %v118
    %v175 = vpop.f32.mrb[0].mxu0
    %v176 = vadd.f32 %v66, %v175
    %v177 = vpop.f32.mrb[0].mxu0
    %v178 = vpop.f32.mrb[0].mxu0
    %v179 = vadd.f32 %v71, %v178
    %v180 = vpop.f32.mrb[0].mxu0
    %181 = vmatprep.mubr.bf16.mxu0 0
    %182 = vmatmul.mubr.bf16.gmra.mrb[0].mxu0 %v121
    %v183 = vpop.f32.mrb[0].mxu0
    %v184 = vadd.f32 %v76, %v183
    %v185 = vpop.f32.mrb[0].mxu0
    %v186 = vpop.f32.mrb[0].mxu0
    %v187 = vadd.f32 %v81, %v186
    %v188 = vpop.f32.mrb[0].mxu0
    %189 = vmatprep.mubr.bf16.mxu0 0
    %190 = vmatmul.mubr.bf16.gmra.mrb[0].mxu0 %v124
    %v191 = vpop.f32.mrb[0].mxu0
    %v192 = vadd.f32 %v86, %v191
    %v193 = vpop.f32.mrb[0].mxu0
    %v194 = vpop.f32.mrb[0].mxu0
    %v195 = vadd.f32 %v91, %v194
    %v196 = vpop.f32.mrb[0].mxu0
    %197 = vdwg.mxu0
    %v198 = vpack.c.bf16 %v171, %v168
    %v199 = vpack.c.bf16 %v179, %v176
    %v200 = vpack.c.bf16 %v187, %v184
    %v201 = vpack.c.bf16 %v195, %v192
    %v202 = vtanh.bf16.pop %v198
    %v203 = vtanh.bf16.pop %v199
    %v204 = vtanh.bf16.pop %v200
    %v205 = vtanh.bf16.pop %v201
    %v206 = vld [vmem:[%s3] sm:$0xf]
    %v207 = vld [vmem:[%s3 + $0x4] sm:$0xf]
    %v208 = vld [vmem:[%s3 + $0x8] sm:$0xf]
    %v209 = vld [vmem:[%s3 + $0xc] sm:$0xf]
    %v210 = vld [vmem:[%s3 + $0x10] sm:$0xf]
    %v211 = vld [vmem:[%s3 + $0x14] sm:$0xf]
    %v212 = vld [vmem:[%s3 + $0x18] sm:$0xf]
    %v213 = vld [vmem:[%s3 + $0x1c] sm:$0xf]
    %v214 = vld [vmem:[%s4] sm:$0xff]
    %v215 = vld [vmem:[%s4 + $0x8] sm:$0xff]
    %v216 = vld [vmem:[%s4 + $0x10] sm:$0xff]
    %v217 = vld [vmem:[%s4 + $0x18] sm:$0xff]
    %v218 = vld [vmem:[%s4 + $0x20] sm:$0xff]
    %v219 = vld [vmem:[%s4 + $0x28] sm:$0xff]
    %v220 = vld [vmem:[%s4 + $0x30] sm:$0xff]
    %v221 = vld [vmem:[%s4 + $0x38] sm:$0xff]
    %223 = vset.pattern.permute.xlu0 0
    %224 = vperm.xlu0 %223, %v214
    %v225 = vpop.permute.xlu0 %224
    %228 = vset.pattern.permute.xlu0 0
    %229 = vperm.xlu0 %228, %v215
    %v230 = vpop.permute.xlu0 %229
    %233 = vset.pattern.permute.xlu0 0
    %234 = vperm.xlu0 %233, %v216
    %v235 = vpop.permute.xlu0 %234
    %238 = vset.pattern.permute.xlu0 0
    %239 = vperm.xlu0 %238, %v217
    %v240 = vpop.permute.xlu0 %239
    %243 = vset.pattern.permute.xlu0 0
    %244 = vperm.xlu0 %243, %v218
    %v245 = vpop.permute.xlu0 %244
    %248 = vset.pattern.permute.xlu0 0
    %249 = vperm.xlu0 %248, %v219
    %v250 = vpop.permute.xlu0 %249
    %253 = vset.pattern.permute.xlu0 0
    %254 = vperm.xlu0 %253, %v220
    %v255 = vpop.permute.xlu0 %254
    %258 = vset.pattern.permute.xlu0 0
    %259 = vperm.xlu0 %258, %v221
    %v260 = vpop.permute.xlu0 %259
    %v270 = vunpack.c.l.b16 %v206
    %v271 = vunpack.c.l.b16 %v207
    %v272 = vunpack.c.l.b16 %v208
    %v273 = vunpack.c.l.b16 %v209
    %v274 = vunpack.c.l.b16 %v210
    %v275 = vunpack.c.l.b16 %v211
    %v276 = vunpack.c.l.b16 %v212
    %v277 = vunpack.c.l.b16 %v213
    %v278 = vpack.c.b16 %v271, %v270
    %v279 = vpack.c.b16 %v273, %v272
    %v280 = vpack.c.b16 %v275, %v274
    %v281 = vpack.c.b16 %v277, %v276
    %vm282 = vcmask 523264
    %v284 = vsel %vm282, %v278, 0
    %v287 = vsel %vm282, %v279, 0
    %v290 = vsel %vm282, %v280, 0
    %v293 = vsel %vm282, %v281, 0
    %295 = vmatprep.subr.bf16.mxu0 0
    %296 = vmatpush1.bf16.msra.mxu0 %v202
    %297 = vmatprep.subr.bf16.mxu0 0
    %298 = vmatpush1.bf16.msra.mxu0 %v203
    %299 = vmatprep.subr.bf16.mxu0 0
    %300 = vmatpush1.bf16.msra.mxu0 %v204
    %301 = vmatprep.subr.bf16.mxu0 0
    %302 = vmatpush1.bf16.msra.mxu0 %v205
    %303 = vmatprep.subr.bf16.mxu0 0
    %304 = vmatpush1.bf16.msra.mxu0 0
    %305 = vmatprep.subr.bf16.mxu0 0
    %306 = vmatpush1.bf16.msra.mxu0 0
    %307 = vmatprep.subr.bf16.mxu0 0
    %308 = vmatpush1.bf16.msra.mxu0 0
    %309 = vmatprep.subr.bf16.mxu0 0
    %310 = vmatpush1.bf16.msra.mxu0 0
    %311 = vmatprep.subr.bf16.mxu0 0
    %312 = vmatpush1.bf16.msra.mxu0 0
    %313 = vmatprep.subr.bf16.mxu0 0
    %314 = vmatpush1.bf16.msra.mxu0 0
    %315 = vmatprep.subr.bf16.mxu0 0
    %316 = vmatpush1.bf16.msra.mxu0 0
    %317 = vmatprep.subr.bf16.mxu0 0
    %318 = vmatpush1.bf16.msra.mxu0 0
    %319 = vmatprep.subr.bf16.mxu0 0
    %320 = vmatpush1.bf16.msra.mxu0 0
    %321 = vmatprep.subr.bf16.mxu0 0
    %322 = vmatpush1.bf16.msra.mxu0 0
    %323 = vmatprep.subr.bf16.mxu0 0
    %324 = vmatpush1.bf16.msra.mxu0 0
    %325 = vmatprep.subr.bf16.mxu0 0
    %326 = vmatpush1.bf16.msra.mxu0 0
    %327 = vmatprep.mubr.bf16.mxu0 0
    %328 = vmatmul.mubr.bf16.gmra.mrb[0].mxu0 %v284
    %v329 = vpop.f32.mrb[0].mxu0
    %v330 = vadd.f32 %v225, %v329
    %v331 = vpop.f32.mrb[0].mxu0
    %v332 = vpop.f32.mrb[0].mxu0
    %v333 = vadd.f32 %v230, %v332
    %v334 = vpop.f32.mrb[0].mxu0
    %335 = vmatprep.mubr.bf16.mxu0 0
    %336 = vmatmul.mubr.bf16.gmra.mrb[0].mxu0 %v287
    %v337 = vpop.f32.mrb[0].mxu0
    %v338 = vadd.f32 %v235, %v337
    %v339 = vpop.f32.mrb[0].mxu0
    %v340 = vpop.f32.mrb[0].mxu0
    %v341 = vadd.f32 %v240, %v340
    %v342 = vpop.f32.mrb[0].mxu0
    %343 = vmatprep.mubr.bf16.mxu0 0
    %344 = vmatmul.mubr.bf16.gmra.mrb[0].mxu0 %v290
    %v345 = vpop.f32.mrb[0].mxu0
    %v346 = vadd.f32 %v245, %v345
    %v347 = vpop.f32.mrb[0].mxu0
    %v348 = vpop.f32.mrb[0].mxu0
    %v349 = vadd.f32 %v250, %v348
    %v350 = vpop.f32.mrb[0].mxu0
    %351 = vmatprep.mubr.bf16.mxu0 0
    %352 = vmatmul.mubr.bf16.gmra.mrb[0].mxu0 %v293
    %v353 = vpop.f32.mrb[0].mxu0
    %v354 = vadd.f32 %v255, %v353
    %v355 = vpop.f32.mrb[0].mxu0
    %v356 = vpop.f32.mrb[0].mxu0
    %v357 = vadd.f32 %v260, %v356
    %v358 = vpop.f32.mrb[0].mxu0
    %359 = vdwg.mxu0
    %v360 = vpack.c.bf16 %v333, %v330
    %v361 = vpack.c.bf16 %v341, %v338
    %v362 = vpack.c.bf16 %v349, %v346
    %v363 = vpack.c.bf16 %v357, %v354
    %v364 = vtanh.bf16.pop %v360
    %v365 = vtanh.bf16.pop %v361
    %v366 = vtanh.bf16.pop %v362
    %v367 = vtanh.bf16.pop %v363
    %v368 = vld [vmem:[%s5] sm:$0xf]
    %v369 = vld [vmem:[%s5 + $0x4] sm:$0xf]
    %v370 = vld [vmem:[%s5 + $0x8] sm:$0xf]
    %v371 = vld [vmem:[%s5 + $0xc] sm:$0xf]
    %v372 = vld [vmem:[%s5 + $0x10] sm:$0xf]
    %v373 = vld [vmem:[%s5 + $0x14] sm:$0xf]
    %v374 = vld [vmem:[%s5 + $0x18] sm:$0xf]
    %v375 = vld [vmem:[%s5 + $0x1c] sm:$0xf]
    %v376 = vld [vmem:[%s6] sm:$0xff]
    %v377 = vld [vmem:[%s6 + $0x8] sm:$0xff]
    %v378 = vld [vmem:[%s6 + $0x10] sm:$0xff]
    %v379 = vld [vmem:[%s6 + $0x18] sm:$0xff]
    %v380 = vld [vmem:[%s6 + $0x20] sm:$0xff]
    %v381 = vld [vmem:[%s6 + $0x28] sm:$0xff]
    %v382 = vld [vmem:[%s6 + $0x30] sm:$0xff]
    %v383 = vld [vmem:[%s6 + $0x38] sm:$0xff]
    %385 = vset.pattern.permute.xlu0 0
    %386 = vperm.xlu0 %385, %v376
    %v387 = vpop.permute.xlu0 %386
    %390 = vset.pattern.permute.xlu0 0
    %391 = vperm.xlu0 %390, %v377
    %v392 = vpop.permute.xlu0 %391
    %395 = vset.pattern.permute.xlu0 0
    %396 = vperm.xlu0 %395, %v378
    %v397 = vpop.permute.xlu0 %396
    %400 = vset.pattern.permute.xlu0 0
    %401 = vperm.xlu0 %400, %v379
    %v402 = vpop.permute.xlu0 %401
    %405 = vset.pattern.permute.xlu0 0
    %406 = vperm.xlu0 %405, %v380
    %v407 = vpop.permute.xlu0 %406
    %410 = vset.pattern.permute.xlu0 0
    %411 = vperm.xlu0 %410, %v381
    %v412 = vpop.permute.xlu0 %411
    %415 = vset.pattern.permute.xlu0 0
    %416 = vperm.xlu0 %415, %v382
    %v417 = vpop.permute.xlu0 %416
    %420 = vset.pattern.permute.xlu0 0
    %421 = vperm.xlu0 %420, %v383
    %v422 = vpop.permute.xlu0 %421
    %v432 = vunpack.c.l.b16 %v368
    %v433 = vunpack.c.l.b16 %v369
    %v434 = vunpack.c.l.b16 %v370
    %v435 = vunpack.c.l.b16 %v371
    %v436 = vunpack.c.l.b16 %v372
    %v437 = vunpack.c.l.b16 %v373
    %v438 = vunpack.c.l.b16 %v374
    %v439 = vunpack.c.l.b16 %v375
    %v440 = vpack.c.b16 %v433, %v432
    %v441 = vpack.c.b16 %v435, %v434
    %v442 = vpack.c.b16 %v437, %v436
    %v443 = vpack.c.b16 %v439, %v438
    %v445 = vsel %vm282, %v440, 0
    %v448 = vsel %vm282, %v441, 0
    %v451 = vsel %vm282, %v442, 0
    %v454 = vsel %vm282, %v443, 0
    %456 = vmatprep.subr.bf16.mxu0 0
    %457 = vmatpush1.bf16.msra.mxu0 %v364
    %458 = vmatprep.subr.bf16.mxu0 0
    %459 = vmatpush1.bf16.msra.mxu0 %v365
    %460 = vmatprep.subr.bf16.mxu0 0
    %461 = vmatpush1.bf16.msra.mxu0 %v366
    %462 = vmatprep.subr.bf16.mxu0 0
    %463 = vmatpush1.bf16.msra.mxu0 %v367
    %464 = vmatprep.subr.bf16.mxu0 0
    %465 = vmatpush1.bf16.msra.mxu0 0
    %466 = vmatprep.subr.bf16.mxu0 0
    %467 = vmatpush1.bf16.msra.mxu0 0
    %468 = vmatprep.subr.bf16.mxu0 0
    %469 = vmatpush1.bf16.msra.mxu0 0
    %470 = vmatprep.subr.bf16.mxu0 0
    %471 = vmatpush1.bf16.msra.mxu0 0
    %472 = vmatprep.subr.bf16.mxu0 0
    %473 = vmatpush1.bf16.msra.mxu0 0
    %474 = vmatprep.subr.bf16.mxu0 0
    %475 = vmatpush1.bf16.msra.mxu0 0
    %476 = vmatprep.subr.bf16.mxu0 0
    %477 = vmatpush1.bf16.msra.mxu0 0
    %478 = vmatprep.subr.bf16.mxu0 0
    %479 = vmatpush1.bf16.msra.mxu0 0
    %480 = vmatprep.subr.bf16.mxu0 0
    %481 = vmatpush1.bf16.msra.mxu0 0
    %482 = vmatprep.subr.bf16.mxu0 0
    %483 = vmatpush1.bf16.msra.mxu0 0
    %484 = vmatprep.subr.bf16.mxu0 0
    %485 = vmatpush1.bf16.msra.mxu0 0
    %486 = vmatprep.subr.bf16.mxu0 0
    %487 = vmatpush1.bf16.msra.mxu0 0
    %488 = vmatprep.mubr.bf16.mxu0 0
    %489 = vmatmul.mubr.bf16.gmra.mrb[0].mxu0 %v445
    %v490 = vpop.f32.mrb[0].mxu0
    %v491 = vadd.f32 %v387, %v490
    %v492 = vpop.f32.mrb[0].mxu0
    %v493 = vpop.f32.mrb[0].mxu0
    %v494 = vadd.f32 %v392, %v493
    %v495 = vpop.f32.mrb[0].mxu0
    %496 = vmatprep.mubr.bf16.mxu0 0
    %497 = vmatmul.mubr.bf16.gmra.mrb[0].mxu0 %v448
    %v498 = vpop.f32.mrb[0].mxu0
    %v499 = vadd.f32 %v397, %v498
    %v500 = vpop.f32.mrb[0].mxu0
    %v501 = vpop.f32.mrb[0].mxu0
    %v502 = vadd.f32 %v402, %v501
    %v503 = vpop.f32.mrb[0].mxu0
    %504 = vmatprep.mubr.bf16.mxu0 0
    %505 = vmatmul.mubr.bf16.gmra.mrb[0].mxu0 %v451
    %v506 = vpop.f32.mrb[0].mxu0
    %v507 = vadd.f32 %v407, %v506
    %v508 = vpop.f32.mrb[0].mxu0
    %v509 = vpop.f32.mrb[0].mxu0
    %v510 = vadd.f32 %v412, %v509
    %v511 = vpop.f32.mrb[0].mxu0
    %512 = vmatprep.mubr.bf16.mxu0 0
    %513 = vmatmul.mubr.bf16.gmra.mrb[0].mxu0 %v454
    %v514 = vpop.f32.mrb[0].mxu0
    %v515 = vadd.f32 %v417, %v514
    %v516 = vpop.f32.mrb[0].mxu0
    %v517 = vpop.f32.mrb[0].mxu0
    %v518 = vadd.f32 %v422, %v517
    %v519 = vpop.f32.mrb[0].mxu0
    %520 = vdwg.mxu0
    %v521 = vpack.c.bf16 %v494, %v491
    %v522 = vpack.c.bf16 %v502, %v499
    %v523 = vpack.c.bf16 %v510, %v507
    %v524 = vpack.c.bf16 %v518, %v515
    %v525 = vtanh.bf16.pop %v521
    %v526 = vtanh.bf16.pop %v522
    %v527 = vtanh.bf16.pop %v523
    %v528 = vtanh.bf16.pop %v524
    %v529 = vld [vmem:[%s7] sm:$0x1]
    %v530 = vld [vmem:[#allocation2] sm:$0x1]
    %532 = vset.pattern.permute.xlu0 0
    %533 = vperm.xlu0 %532, %v530
    %v534 = vpop.permute.xlu0 %533
    %v536 = vlaneseq
    %v537 = vshrl.u32 %v536, 7
    %v538 = vsub.s32 0, %v537
    %v539 = vrot.slane %v534, %v538
    %v541 = vsel %vm282, %v529, 0
    %543 = vmatprep.subr.bf16.mxu0 0
    %544 = vmatpush1.bf16.msra.mxu0 %v525
    %545 = vmatprep.subr.bf16.mxu0 0
    %546 = vmatpush1.bf16.msra.mxu0 %v526
    %547 = vmatprep.subr.bf16.mxu0 0
    %548 = vmatpush1.bf16.msra.mxu0 %v527
    %549 = vmatprep.subr.bf16.mxu0 0
    %550 = vmatpush1.bf16.msra.mxu0 %v528
    %551 = vmatprep.subr.bf16.mxu0 0
    %552 = vmatpush1.bf16.msra.mxu0 0
    %553 = vmatprep.subr.bf16.mxu0 0
    %554 = vmatpush1.bf16.msra.mxu0 0
    %555 = vmatprep.subr.bf16.mxu0 0
    %556 = vmatpush1.bf16.msra.mxu0 0
    %557 = vmatprep.subr.bf16.mxu0 0
    %558 = vmatpush1.bf16.msra.mxu0 0
    %559 = vmatprep.subr.bf16.mxu0 0
    %560 = vmatpush1.bf16.msra.mxu0 0
    %561 = vmatprep.subr.bf16.mxu0 0
    %562 = vmatpush1.bf16.msra.mxu0 0
    %563 = vmatprep.subr.bf16.mxu0 0
    %564 = vmatpush1.bf16.msra.mxu0 0
    %565 = vmatprep.subr.bf16.mxu0 0
    %566 = vmatpush1.bf16.msra.mxu0 0
    %567 = vmatprep.subr.bf16.mxu0 0
    %568 = vmatpush1.bf16.msra.mxu0 0
    %569 = vmatprep.subr.bf16.mxu0 0
    %570 = vmatpush1.bf16.msra.mxu0 0
    %571 = vmatprep.subr.bf16.mxu0 0
    %572 = vmatpush1.bf16.msra.mxu0 0
    %573 = vmatprep.subr.bf16.mxu0 0
    %574 = vmatpush1.bf16.msra.mxu0 0
    %575 = vmatprep.mubr.bf16.mxu0 0
    %576 = vmatmul.mubr.bf16.gmra.mrb[0].mxu0 %v541
    %v577 = vpop.f32.mrb[0].mxu0
    %v578 = vadd.f32 %v539, %v577
    %v579 = vpop.f32.mrb[0].mxu0
    %v580 = vpop.f32.mrb[0].mxu0
    %v581 = vpop.f32.mrb[0].mxu0
    %582 = vdwg.mxu0
    %583 = vst [vmem:[#allocation3] sm:$0x1] %v578
    // Predicated region
    $region38: #{tpu_custom_call.1} parent=1 // pred_check
      _
    $region39: #{tpu_custom_call.1} parent=1 // pred_check_branch
      %585 = sbr.rel (0) target = $region41
    $region40: #{tpu_custom_call.1} parent=1 // pred_region
      %s587 = ssub.s32 16, 16
      %588 = vsyncadd [#allocation4], %s587
      %s590 = sshll.u32 [#allocation3], 4
      %s591 = int_to_ptr.vmem [resolvable:$true] %s590
      %593 = dma.vmem_to_hbm [thread:$0]  %s591, 16, %s9, [#allocation4]
    $region41: #{tpu_custom_call.1} parent=1 // pred_fallthru
      _
    // Predicated region
    $region42: #{tpu_custom_call.1} parent=1 // pred_check
      _
    $region43: #{tpu_custom_call.1} parent=1 // pred_check_branch
      %595 = sbr.rel (0) target = $region45
    $region44: #{tpu_custom_call.1} parent=1 // pred_region
      %596 = dma.done [#allocation4], 16
    $region45: #{tpu_custom_call.1} parent=1 // pred_fallthru
      _
    %597 = vsyncpa [#allocation4], 1

</llo_original>
